<compile_context>
chip_gen: v7x
topology: tpu7x:2x2x1
jax: 0.10.0
libtpu: 0.0.40
codegen_flags: <defaults>
</compile_context>

<pallas_src>
import functools

import jax
import jax.numpy as jnp
from jax import lax
from jax.experimental import pallas as pl
from jax.experimental.pallas import tpu as pltpu


def _focal_loss_kernel(x_ref, t_ref, out_ref, acc_ref, *, gamma, rows_total,
                       rpc, mask_rows):
    """One grid step = one (tr, 128)-pixel tile of one (batch, chunk).

    x_ref  : (1, C, tr, 128) logits tile (native dtype)
    t_ref  : (1, tr, 128)    int8/int32 target class per pixel (-1 = padded)
    out_ref: (1, 1, 128)     per-(batch, chunk) partial sums (last ri step)
    acc_ref: (tr, 128)       f32 VMEM accumulator, persistent across ri steps
    """
    ci = pl.program_id(1)
    ri = pl.program_id(2)

    @pl.when(ri == 0)
    def _():
        acc_ref[...] = jnp.zeros_like(acc_ref)

    C = x_ref.shape[1]
    tr = acc_ref.shape[0]

    # Targets are int8 in HBM; widen once after the load.
    t = t_ref[0].astype(jnp.int32)                       # (tr, 128)

    # Per-pixel gather of the target-class logit: select-accumulate in the
    # native dtype (pure bit-selects on dense (tr,128) vregs), cast to f32
    # exactly once afterwards.
    picked = jnp.zeros(t.shape, x_ref.dtype)
    if C <= 32:
        for c in range(C):                               # small C: full unroll
            picked = jnp.where(t == c, x_ref[0, c], picked)
    else:
        # Large C: partial unroll keeps the instruction stream and vreg live
        # ranges bounded; x_ref[0, c] is a cheap dynamic channel-axis offset.
        def body(c, p):
            return jnp.where(t == c, x_ref[0, c], p)
        picked = lax.fori_loop(0, C, body, picked, unroll=8)

    # Padded pixels (t == -1) keep picked == 0 -> nll = 0 -> F_loss = 0.
    nll = -(picked.astype(jnp.float32))                  # (tr, 128)

    pt = jnp.exp(-nll)
    omp = 1.0 - pt

    g = float(gamma)
    if g.is_integer() and 0 <= int(g) <= 16:
        ig = int(g)
        if ig == 0:
            mod = jnp.ones_like(omp)
        else:
            mod = omp
            for _ in range(ig - 1):
                mod = mod * omp                          # VPU muls, no pow
    else:
        # Matches torch: pt may exceed 1 (raw logits), so (1-pt)**gamma can be
        # NaN for non-integer gamma — same behavior as the PyTorch module.
        mod = jnp.power(omp, g)

    f_loss = mod * nll                                   # (tr, 128)

    if mask_rows:
        # Ragged last row-tile (tr does not divide R): zero out-of-range rows
        # BEFORE accumulating — the select kills any NaN/Inf garbage from the
        # partially-fetched edge block.  Only compiled in when needed.
        row = lax.broadcasted_iota(jnp.int32, f_loss.shape, 0)
        grow = (ci * rpc + ri) * tr + row                # global 128-px row
        f_loss = jnp.where(grow < rows_total, f_loss, 0.0)

    acc_ref[...] += f_loss

    @pl.when(ri == pl.num_programs(2) - 1)
    def _():
        out_ref[...] = jnp.sum(acc_ref[...], axis=0).reshape(1, 1, 128)


def _pick_tr(R, target):
    """Row-tile height: prefer a multiple-of-32 divisor of R at/below the
    target (row mask vanishes entirely); otherwise a multiple of 32."""
    if R <= target:
        return R
    t = (target // 32) * 32
    lo = max(32, t // 2)
    cand = t
    while cand >= lo:
        if R % cand == 0:
            return cand
        cand -= 32
    return max(32, t)


def focal_loss(inputs, targets, *, gamma=2.0, reduction="mean", weight=None,
               block_bytes=4 * 1024 * 1024):
    """Pallas TPU focal loss.

    inputs : (N, C, H, W) logits (PyTorch NCHW convention), any float dtype
    targets: (N, H, W)    integer class labels in [0, C)
    """
    if weight is not None:
        # TODO(synk): per-class `weight` (scale the gathered logit by weight[c]).
        raise NotImplementedError("weight is not supported")
    if reduction not in ("mean", "sum"):
        # TODO(synk): reduction='none' (per-pixel loss map) not exposed.
        raise NotImplementedError("reduction='none' not implemented")

    N, C, H, W = inputs.shape
    S = H * W
    M = N * S  # unpadded element count (mean denominator)

    # Free reshapes only: spatial goes on the lane axis.
    x = inputs.reshape(N, C, S)
    t_dtype = jnp.int8 if C <= 127 else jnp.int32
    t = targets.reshape(N, S).astype(t_dtype)            # 1 B/px target traffic

    if S % 128 != 0:
        # TODO(synk): a dedicated remainder path could avoid this HBM copy of
        # the logits; a flat (C, S)-tiled kernel drops vreg density to 1/8 for
        # C < 8 and becomes VPU-bound, so the pad is kept for this rare
        # unaligned case.  Aligned sizes (the common case) never pad/copy.
        pad = 128 - S % 128
        x = jnp.pad(x, ((0, 0), (0, 0), (0, pad)))
        t = jnp.pad(t, ((0, 0), (0, pad)), constant_values=-1)
    Sp = x.shape[-1]
    R = Sp // 128

    x = x.reshape(N, C, R, 128)                          # free reshape
    t = t.reshape(N, R, 128)

    # ---- Tile sizing ------------------------------------------------------
    itemsize = jnp.dtype(inputs.dtype).itemsize
    t_itemsize = jnp.dtype(t_dtype).itemsize
    # Bytes per row-of-128-px: double-buffered x + t blocks + f32 accumulator.
    per_row = 2 * C * 128 * itemsize + 2 * 128 * t_itemsize + 128 * 4
    vmem_budget = 36 * 1024 * 1024        # keeps working set inside v7x 64 MiB/TC
    tr_cap = max(32, vmem_budget // per_row)
    tr_target = max(block_bytes // (C * 128 * itemsize), 256)   # floor vs large C
    tr = _pick_tr(R, min(tr_target, tr_cap))
    NR = pl.cdiv(R, tr)                                  # row-tiles per image
    mask_rows = (R % tr) != 0

    # Spatial-chunk "parallel" axis: only when the batch alone can't feed two
    # TensorCores (v7x) and the split is exact (no wasted steps elsewhere).
    NC = 2 if (N % 2 == 1 and NR % 2 == 0) else 1
    rpc = NR // NC

    vmem_limit = int(min(max(per_row * tr + (4 << 20), 32 << 20), 48 << 20))

    partials = pl.pallas_call(
        functools.partial(_focal_loss_kernel, gamma=float(gamma),
                          rows_total=R, rpc=rpc, mask_rows=mask_rows),
        out_shape=jax.ShapeDtypeStruct((N, NC, 128), jnp.float32),
        grid_spec=pltpu.PrefetchScalarGridSpec(
            num_scalar_prefetch=0,
            grid=(N, NC, rpc),
            in_specs=[
                pl.BlockSpec((1, C, tr, 128),
                             lambda n, ci, ri: (n, 0, ci * rpc + ri, 0)),
                pl.BlockSpec((1, tr, 128),
                             lambda n, ci, ri: (n, ci * rpc + ri, 0)),
            ],
            out_specs=pl.BlockSpec((1, 1, 128),
                                   lambda n, ci, ri: (n, ci, 0)),
            scratch_shapes=[pltpu.VMEM((tr, 128), jnp.float32)],
        ),
        compiler_params=pltpu.CompilerParams(
            # batch + chunk axes parallel (both TCs on v7x), spatial reduction
            # axis arbitrary (per-(n,chunk) accumulator lives across it).
            dimension_semantics=("parallel", "parallel", "arbitrary"),
            vmem_limit_bytes=vmem_limit),
    )(x, t)

    total = jnp.sum(partials)
    if reduction == "mean":
        return total / jnp.float32(M)
    return total


def _focal_loss_ref(inputs, targets, gamma=2.0):
    """Pure-JAX reference mirroring the PyTorch module (reduction='mean')."""
    N, C, H, W = inputs.shape
    x = jnp.transpose(inputs, (0, 2, 3, 1)).reshape(-1, C).astype(jnp.float32)
    t = targets.reshape(-1)
    nll = -jnp.take_along_axis(x, t[:, None], axis=1)[:, 0]
    pt = jnp.exp(-nll)
    f = (1.0 - pt) ** gamma * nll
    return jnp.mean(f)


if __name__ == "__main__":
    key = jax.random.PRNGKey(0)
    k1, k2 = jax.random.split(key)

    N, C, H, W = 2, 4, 16, 16
    # "inputs" are used directly by nll_loss in the module (no log_softmax);
    # random values are fine for a synthetic check.
    logits = jax.random.normal(k1, (N, C, H, W), dtype=jnp.float32)
    labels = jax.random.randint(k2, (N, H, W), 0, C, dtype=jnp.int32)

    out = focal_loss(logits, labels, gamma=2.0, reduction="mean")
    out = jax.block_until_ready(out)

    ref = _focal_loss_ref(logits, labels, gamma=2.0)
    assert jnp.allclose(out, ref, rtol=1e-5, atol=1e-5), (out, ref)

    print("KERNEL_OK")
</pallas_src>

<mosaic_0001>
module attributes {stable_mosaic.version = 11 : i64} {
  func.func @_focal_loss_kernel(%arg0: i32, %arg1: i32, %arg2: i32, %arg3: memref<1x4x2x128xf32, #tpu.memory_space<vmem>>, %arg4: memref<1x2x128xi8, #tpu.memory_space<vmem>>, %arg5: memref<1x1x128xf32, #tpu.memory_space<vmem>>, %arg6: memref<2x128xf32, #tpu.memory_space<vmem>>) attributes {dimension_semantics = [#tpu.dimension_semantics<parallel>, #tpu.dimension_semantics<parallel>, #tpu.dimension_semantics<arbitrary>], iteration_bounds = array<i64: 2, 1, 1>, scalar_prefetch = 0 : i64, scratch_operands = 1 : i64, tpu.core_type = #tpu.core_type<tc>, window_params = [{transform_indices = @transform_0, window_bounds = array<i64: 1, 4, 2, 128>}, {transform_indices = @transform_1, window_bounds = array<i64: 1, 2, 128>}, {transform_indices = @transform_2, window_bounds = array<i64: 1, 1, 128>}]} {
    %c0_i32 = arith.constant 0 : i32
    %0 = arith.cmpi eq, %arg2, %c0_i32 : i32
    %1 = arith.extui %0 : i1 to i32
    %c0_i32_0 = arith.constant 0 : i32
    %2 = arith.cmpi ne, %1, %c0_i32_0 : i32
    scf.if %2 {
      %cst_26 = arith.constant 0.000000e+00 : f32
      %42 = vector.broadcast %cst_26 : f32 to vector<2x128xf32>
      %c0_27 = arith.constant 0 : index
      %c0_28 = arith.constant 0 : index
      %43 = vector.load %arg6[%c0_27, %c0_28] : memref<2x128xf32, #tpu.memory_space<vmem>>, vector<2x128xf32>
      tpu.vector_store %arg6[%c0_27, %c0_28], %42 {strides = array<i32>} : memref<2x128xf32, #tpu.memory_space<vmem>>, vector<2x128xf32>,
    } else {
    }
    %c0 = arith.constant 0 : index
    %c0_1 = arith.constant 0 : index
    %c0_2 = arith.constant 0 : index
    %3 = vector.load %arg4[%c0, %c0_1, %c0_2] : memref<1x2x128xi8, #tpu.memory_space<vmem>>, vector<1x2x128xi8>
    %4 = vector.shape_cast %3 : vector<1x2x128xi8> to vector<2x128xi8>
    %5 = arith.extsi %4 : vector<2x128xi8> to vector<2x128xi32>
    %cst = arith.constant 0.000000e+00 : f32
    %6 = vector.broadcast %cst : f32 to vector<2x128xf32>
    %c0_i32_3 = arith.constant 0 : i32
    %7 = vector.broadcast %c0_i32_3 : i32 to vector<2x128xi32>
    %8 = arith.cmpi eq, %5, %7 : vector<2x128xi32>
    %c0_4 = arith.constant 0 : index
    %c0_5 = arith.constant 0 : index
    %c0_6 = arith.constant 0 : index
    %c0_7 = arith.constant 0 : index
    %9 = vector.load %arg3[%c0_4, %c0_5, %c0_6, %c0_7] : memref<1x4x2x128xf32, #tpu.memory_space<vmem>>, vector<1x1x2x128xf32>
    %10 = vector.shape_cast %9 : vector<1x1x2x128xf32> to vector<2x128xf32>
    %11 = arith.select %8, %10, %6 : vector<2x128xi1>, vector<2x128xf32>
    %c1_i32 = arith.constant 1 : i32
    %12 = vector.broadcast %c1_i32 : i32 to vector<2x128xi32>
    %13 = arith.cmpi eq, %5, %12 : vector<2x128xi32>
    %c0_8 = arith.constant 0 : index
    %c1 = arith.constant 1 : index
    %c0_9 = arith.constant 0 : index
    %c0_10 = arith.constant 0 : index
    %14 = vector.load %arg3[%c0_8, %c1, %c0_9, %c0_10] : memref<1x4x2x128xf32, #tpu.memory_space<vmem>>, vector<1x1x2x128xf32>
    %15 = vector.shape_cast %14 : vector<1x1x2x128xf32> to vector<2x128xf32>
    %16 = arith.select %13, %15, %11 : vector<2x128xi1>, vector<2x128xf32>
    %c2_i32 = arith.constant 2 : i32
    %17 = vector.broadcast %c2_i32 : i32 to vector<2x128xi32>
    %18 = arith.cmpi eq, %5, %17 : vector<2x128xi32>
    %c0_11 = arith.constant 0 : index
    %c2 = arith.constant 2 : index
    %c0_12 = arith.constant 0 : index
    %c0_13 = arith.constant 0 : index
    %19 = vector.load %arg3[%c0_11, %c2, %c0_12, %c0_13] : memref<1x4x2x128xf32, #tpu.memory_space<vmem>>, vector<1x1x2x128xf32>
    %20 = vector.shape_cast %19 : vector<1x1x2x128xf32> to vector<2x128xf32>
    %21 = arith.select %18, %20, %16 : vector<2x128xi1>, vector<2x128xf32>
    %c3_i32 = arith.constant 3 : i32
    %22 = vector.broadcast %c3_i32 : i32 to vector<2x128xi32>
    %23 = arith.cmpi eq, %5, %22 : vector<2x128xi32>
    %c0_14 = arith.constant 0 : index
    %c3 = arith.constant 3 : index
    %c0_15 = arith.constant 0 : index
    %c0_16 = arith.constant 0 : index
    %24 = vector.load %arg3[%c0_14, %c3, %c0_15, %c0_16] : memref<1x4x2x128xf32, #tpu.memory_space<vmem>>, vector<1x1x2x128xf32>
    %25 = vector.shape_cast %24 : vector<1x1x2x128xf32> to vector<2x128xf32>
    %26 = arith.select %23, %25, %21 : vector<2x128xi1>, vector<2x128xf32>
    %cst_17 = arith.constant 0.000000e+00 : f32
    %27 = vector.broadcast %cst_17 : f32 to vector<2x128xf32>
    %28 = arith.subf %27, %26 : vector<2x128xf32>
    %cst_18 = arith.constant 0.000000e+00 : f32
    %29 = vector.broadcast %cst_18 : f32 to vector<2x128xf32>
    %30 = arith.subf %29, %28 : vector<2x128xf32>
    %31 = math.exp %30 : vector<2x128xf32>
    %cst_19 = arith.constant 1.000000e+00 : f32
    %32 = vector.broadcast %cst_19 : f32 to vector<2x128xf32>
    %33 = arith.subf %32, %31 : vector<2x128xf32>
    %34 = arith.mulf %33, %33 : vector<2x128xf32>
    %35 = arith.mulf %34, %28 : vector<2x128xf32>
    %c0_20 = arith.constant 0 : index
    %c0_21 = arith.constant 0 : index
    %36 = vector.load %arg6[%c0_20, %c0_21] : memref<2x128xf32, #tpu.memory_space<vmem>>, vector<2x128xf32>
    %37 = arith.addf %36, %35 : vector<2x128xf32>
    %c0_22 = arith.constant 0 : index
    %c0_23 = arith.constant 0 : index
    %38 = vector.load %arg6[%c0_22, %c0_23] : memref<2x128xf32, #tpu.memory_space<vmem>>, vector<2x128xf32>
    tpu.vector_store %arg6[%c0_22, %c0_23], %37 {strides = array<i32>} : memref<2x128xf32, #tpu.memory_space<vmem>>, vector<2x128xf32>,
    %c0_i32_24 = arith.constant 0 : i32
    %39 = arith.cmpi eq, %arg2, %c0_i32_24 : i32
    %40 = arith.extui %39 : i1 to i32
    %c0_i32_25 = arith.constant 0 : i32
    %41 = arith.cmpi ne, %40, %c0_i32_25 : i32
    scf.if %41 {
      %c0_26 = arith.constant 0 : index
      %c0_27 = arith.constant 0 : index
      %42 = vector.load %arg6[%c0_26, %c0_27] : memref<2x128xf32, #tpu.memory_space<vmem>>, vector<2x128xf32>
      %cst_28 = arith.constant dense<0.000000e+00> : vector<128xf32>
      %43 = vector.multi_reduction <add>, %42, %cst_28 [0] : vector<2x128xf32> to vector<128xf32>
      %44 = vector.shape_cast %43 : vector<128xf32> to vector<1x1x128xf32>
      %c0_29 = arith.constant 0 : index
      %c0_30 = arith.constant 0 : index
      %c0_31 = arith.constant 0 : index
      %45 = vector.load %arg5[%c0_29, %c0_30, %c0_31] : memref<1x1x128xf32, #tpu.memory_space<vmem>>, vector<1x1x128xf32>
      tpu.vector_store %arg5[%c0_29, %c0_30, %c0_31], %44 {strides = array<i32>} : memref<1x1x128xf32, #tpu.memory_space<vmem>>, vector<1x1x128xf32>,
    } else {
    }
    return
  }
  func.func @transform_0(%arg0: i32, %arg1: i32, %arg2: i32) -> (i32, i32, i32, i32) {
    %c1_i32 = arith.constant 1 : i32
    %0 = arith.muli %arg1, %c1_i32 : i32
    %1 = arith.addi %0, %arg2 : i32
    %c0_i32 = arith.constant 0 : i32
    %c0_i32_0 = arith.constant 0 : i32
    %c0_i32_1 = arith.constant 0 : i32
    return %arg0, %c0_i32, %1, %c0_i32_0 : i32, i32, i32, i32
  }
  func.func @transform_1(%arg0: i32, %arg1: i32, %arg2: i32) -> (i32, i32, i32) {
    %c1_i32 = arith.constant 1 : i32
    %0 = arith.muli %arg1, %c1_i32 : i32
    %1 = arith.addi %0, %arg2 : i32
    %c0_i32 = arith.constant 0 : i32
    %c0_i32_0 = arith.constant 0 : i32
    return %arg0, %1, %c0_i32 : i32, i32, i32
  }
  func.func @transform_2(%arg0: i32, %arg1: i32, %arg2: i32) -> (i32, i32, i32) {
    %c0_i32 = arith.constant 0 : i32
    %c0_i32_0 = arith.constant 0 : i32
    return %arg0, %arg1, %c0_i32 : i32, i32, i32
  }
}

</mosaic_0001>

<llo_original>
// kernel: tpu_custom_call.1
$region0: #{tpu_custom_call.1}
  #allocation0 [shape = 'u32[]', space=smem, size = 0x4, offset = 0x4, fixed_abs, tag = 'smem constant byte address 0x4 - core index']
  #allocation1 [shape = 'u32[144,128]{1,0:T(1,128)}', space=vmem, size = 0x12000, scoped, tag = 'internal scratch']
  #allocation2 [shape = 'f32[2,128]{1,0:T(2,128)}', space=vmem, size = 0x400, scoped, tag = 'scratch operand']
  %s0 = inlined_call_operand.hbm [shape: f32[2,4,2,128], index: 0, kind: input, shape index: {}]
  %s1 = inlined_call_operand.vmem [shape: s8[2,2,128], index: 1, kind: input, shape index: {}]
  %s2 = inlined_call_operand.hbm [shape: f32[2,1,128], index: 2, kind: output, shape index: {}]
  %s3 = sld [smem:[#allocation0]]
  $region53: #{tpu_custom_call.1} parent=0
    _
  %s5 = ssub.s32 1, %s3
  %s6 = scalar_select 0, %s5, %s3
  $region1: #{tpu_custom_call.1} parent=0
    #allocation3 [shape = 'u8[8192]{0}', space=vmem, size = 0x2000, scoped, tag = 'input window, operand 0']
    #allocation4 [shape = 's32[2]{0}', space=sflag, size = 0x8, scoped, tag = 'scoped memory for tpu_custom_call.1']
    #allocation5 [shape = 's32[2]{0}', space=sflag, size = 0x8, scoped, tag = 'scoped memory for tpu_custom_call.1']
    #allocation6 [shape = 'u8[1024]{0}', space=vmem, size = 0x400, scoped, tag = 'output window, operand 0']
    %7 = vsyncpa [#allocation4], 0
    %s8 = scalar_lea.sflag [#allocation4], 1
    %9 = vsyncpa %s8, 0
    %10 = vsyncpa [#allocation5], 0
    %s11 = scalar_lea.sflag [#allocation5], 1
    %12 = vsyncpa %s11, 0
    loop: start=0, step=1, limit=4
    $region2: #{tpu_custom_call.1} parent=1 // loop_pre_header
      _
    $region3: #{tpu_custom_call.1} parent=1 // loop_header
      %s14 = sphi 0, %s18
      %p15 = scmp.ge.s32.totalorder %s14, 4
      %s21 = sphi 0, %s40
      %s22 = sphi 0, %s36
      %s23 = sphi 0, %s32
      %s24 = sphi 0, %s21
      %s25 = sphi 0, %s22
      %s26 = sphi 0, %s23
      %s27 = sphi 0, %s24
      %s28 = sphi 0, %s25
      %s29 = sphi 0, %s26
      %s47 = sphi 0, %s49
      %s50 = sphi 0, %s47
      %s51 = sphi 0, %s50
      %s67 = sphi 0, %s51
      %s77 = sphi 0, %s79
      %s80 = sphi 0, %s77
      %s81 = sphi 0, %s80
      %s97 = sphi 0, %s81
      %s105 = sphi 0, %s107
      %s108 = sphi 0, %s105
      %s109 = sphi 0, %s108
      %s125 = sphi 0, %s109
    $region4: #{tpu_custom_call.1} parent=1 // loop_header_branch
      %17 = sbr.rel (%p15) target = $region8
    $region5: #{tpu_custom_call.1} parent=1 // loop_body
      %s19 = ssub.s32 %s14, 1
      %s20 = ssub.s32 %s14, 2
      %s30 = sadd.s32 1, %s23
      %p31 = scmp.ge.s32.totalorder %s30, 1
      %s32 = scalar_select %p31, 0, %s30
      %s33 = sadd.s32 1, %s22
      %s34 = scalar_select %p31, %s33, %s22
      %p35 = scmp.ge.s32.totalorder %s34, 1
      %s36 = scalar_select %p35, 0, %s34
      %s37 = sadd.s32 1, %s21
      %s38 = scalar_select %p35, %s37, %s21
      %p39 = scmp.ge.s32.totalorder %s38, 2
      %s40 = scalar_select %p39, 0, %s38
      %s41 = sadd.s32 %s22, %s23
      %s42 = sadd.s32 %s36, %s32
      %s43 = ssub.s32 %s21, %s40
      %s44 = ssub.s32 %s41, %s42
      %s45 = sor.u32 %s43, %s44
      %p46 = scmp.eq.s32.totalorder %s45, 0
      %s48 = sadd.s32 %s47, 1
      %s49 = scalar_select %p46, %s47, %s48
      %p52 = pneg %p46
      %p53 = scmp.eq.s32.totalorder %s14, 1
      %p54 = por %p52, %p53
      %p55 = scmp.ne.s32.totalorder %s47, %s50
      %p56 = scmp.eq.s32.totalorder %s14, 0
      %p57 = por %p55, %p56
      %p58 = scmp.ne.s32.totalorder %s47, %s50
      %p59 = scmp.eq.s32.totalorder %s19, 1
      %p60 = por %p58, %p59
      %p61 = scmp.ne.s32.totalorder %s50, %s51
      %p62 = scmp.eq.s32.totalorder %s19, 0
      %p63 = por %p61, %p62
      %p64 = scmp.ne.s32.totalorder %s50, %s51
      %p65 = scmp.eq.s32.totalorder %s20, 1
      %p66 = por %p64, %p65
      %p68 = scmp.ne.s32.totalorder %s51, %s67
      %p69 = scmp.eq.s32.totalorder %s20, 0
      %p70 = por %p68, %p69
      %s71 = sadd.s32 %s22, %s23
      %s72 = sadd.s32 %s36, %s32
      %s73 = ssub.s32 %s21, %s40
      %s74 = ssub.s32 %s71, %s72
      %s75 = sor.u32 %s73, %s74
      %p76 = scmp.eq.s32.totalorder %s75, 0
      %s78 = sadd.s32 %s77, 1
      %s79 = scalar_select %p76, %s77, %s78
      %p82 = pneg %p76
      %p83 = scmp.eq.s32.totalorder %s14, 1
      %p84 = por %p82, %p83
      %p85 = scmp.ne.s32.totalorder %s77, %s80
      %p86 = scmp.eq.s32.totalorder %s14, 0
      %p87 = por %p85, %p86
      %p88 = scmp.ne.s32.totalorder %s77, %s80
      %p89 = scmp.eq.s32.totalorder %s19, 1
      %p90 = por %p88, %p89
      %p91 = scmp.ne.s32.totalorder %s80, %s81
      %p92 = scmp.eq.s32.totalorder %s19, 0
      %p93 = por %p91, %p92
      %p94 = scmp.ne.s32.totalorder %s80, %s81
      %p95 = scmp.eq.s32.totalorder %s20, 1
      %p96 = por %p94, %p95
      %p98 = scmp.ne.s32.totalorder %s81, %s97
      %p99 = scmp.eq.s32.totalorder %s20, 0
      %p100 = por %p98, %p99
      %s101 = ssub.s32 %s21, %s40
      %s102 = ssub.s32 %s22, %s36
      %s103 = sor.u32 %s101, %s102
      %p104 = scmp.eq.s32.totalorder %s103, 0
      %s106 = sadd.s32 %s105, 1
      %s107 = scalar_select %p104, %s105, %s106
      %p110 = pneg %p104
      %p111 = scmp.eq.s32.totalorder %s14, 1
      %p112 = por %p110, %p111
      %p113 = scmp.ne.s32.totalorder %s105, %s108
      %p114 = scmp.eq.s32.totalorder %s14, 0
      %p115 = por %p113, %p114
      %p116 = scmp.ne.s32.totalorder %s105, %s108
      %p117 = scmp.eq.s32.totalorder %s19, 1
      %p118 = por %p116, %p117
      %p119 = scmp.ne.s32.totalorder %s108, %s109
      %p120 = scmp.eq.s32.totalorder %s19, 0
      %p121 = por %p119, %p120
      %p122 = scmp.ne.s32.totalorder %s108, %s109
      %p123 = scmp.eq.s32.totalorder %s20, 1
      %p124 = por %p122, %p123
      %p126 = scmp.ne.s32.totalorder %s109, %s125
      %p127 = scmp.eq.s32.totalorder %s20, 0
      %p128 = por %p126, %p127
      %p129 = scmp.le.s32.totalorder 1, %s14
      %p130 = scmp.lt.s32.totalorder %s14, 3
      %p131 = pnand %p129, %p130
      %p132 = pneg %p131
      // Predicated region
      $region9: #{tpu_custom_call.1} parent=5 // pred_check
        _
      $region10: #{tpu_custom_call.1} parent=5 // pred_check_branch
        %134 = sbr.rel (%p131) target = $region12
      $region11: #{tpu_custom_call.1} parent=5 // pred_region
        %s135 = ssub.s32 %s14, 1
      $region12: #{tpu_custom_call.1} parent=5 // pred_fallthru
        _
      %p136 = scmp.lt.s32.totalorder %s14, 2
      // Predicated region
      $region13: #{tpu_custom_call.1} parent=5 // pred_check
        %p137 = pneg %p136
      $region14: #{tpu_custom_call.1} parent=5 // pred_check_branch
        %139 = sbr.rel (%p137) target = $region16
      $region15: #{tpu_custom_call.1} parent=5 // pred_region
        // Predicated region
        $region17: #{tpu_custom_call.1} parent=15 // pred_check
          %p140 = pneg %p57
        $region18: #{tpu_custom_call.1} parent=15 // pred_check_branch
          %142 = sbr.rel (%p140) target = $region20
        $region19: #{tpu_custom_call.1} parent=15 // pred_region
          %s143 = sand.u32 %s47, 1
          %s144 = scalar_lea.sflag [#allocation4], %s143
          %s145 = sand.u32 %s47, 1
          %s146 = smul.addr %s145, 8
          %s147 = scalar_lea.vmem [#allocation3], %s146
          %s148 = sadd.s32 %s22, %s23
          %s150 = ssub.s32 128, 128
          %151 = vsyncadd %s144, %s150
          %s152 = smul.addr %s21, 4
          %s153 = sadd.s32 %s148, %s152
          %s154 = smul.addr %s153, 32
          %s155 = scalar_lea.hbm %s0, %s154
          %s156 = sshll.u32 %s147, 4
          %s157 = int_to_ptr.vmem [resolvable:$true] %s156
          %162 = dma.hbm_to_vmem [thread:$0]  %s155, 128, %s157, %s144, 32, 32, 2
        $region20: #{tpu_custom_call.1} parent=15 // pred_fallthru
          _
        // Predicated region
        $region21: #{tpu_custom_call.1} parent=15 // pred_check
          %p163 = pneg %p87
        $region22: #{tpu_custom_call.1} parent=15 // pred_check_branch
          %165 = sbr.rel (%p163) target = $region24
        $region23: #{tpu_custom_call.1} parent=15 // pred_region
          %s166 = sadd.s32 %s22, %s23
          %p167 = scmp.lt.s32.totalorder %s21, 1
          %s168 = scalar_select %p167, %s21, 1
          %p169 = scmp.lt.s32.totalorder %s166, 0
          %s170 = scalar_select %p169, %s166, 0
          %s171 = sadd.s32 %s170, %s168
          %s172 = scalar_lea.vmem %s1, %s171
          %s173 = sadd.s32 %s22, %s23
        $region24: #{tpu_custom_call.1} parent=15 // pred_fallthru
          _
      $region16: #{tpu_custom_call.1} parent=5 // pred_fallthru
        _
      %p174 = scmp.le.s32.totalorder 1, %s14
      %p175 = scmp.lt.s32.totalorder %s14, 3
      %p176 = pnand %p174, %p175
      %p177 = pneg %p176
      // Predicated region
      $region25: #{tpu_custom_call.1} parent=5 // pred_check
        _
      $region26: #{tpu_custom_call.1} parent=5 // pred_check_branch
        %179 = sbr.rel (%p176) target = $region28
      $region27: #{tpu_custom_call.1} parent=5 // pred_region
        %s180 = ssub.s32 %s14, 1
        %s181 = sand.u32 %s50, 1
        %s182 = scalar_lea.sflag [#allocation4], %s181
        %s183 = sand.u32 %s50, 1
        %s184 = smul.addr %s183, 8
        %s185 = scalar_lea.vmem [#allocation3], %s184
        // Predicated region
        $region29: #{tpu_custom_call.1} parent=27 // pred_check
          %p186 = pneg %p63
        $region30: #{tpu_custom_call.1} parent=27 // pred_check_branch
          %188 = sbr.rel (%p186) target = $region32
        $region31: #{tpu_custom_call.1} parent=27 // pred_region
          %189 = dma.done %s182, 128
        $region32: #{tpu_custom_call.1} parent=27 // pred_fallthru
          _
        %s190 = sand.u32 %s50, 1
        %s191 = scalar_lea.sflag [#allocation4], %s190
        %s192 = sand.u32 %s50, 1
        %s193 = smul.addr %s192, 8
        %s194 = scalar_lea.vmem [#allocation3], %s193
        %p195 = pneg %p63
        %p196 = pneg %p60
        %s197 = sadd.s32 %s25, %s26
        %p198 = scmp.lt.s32.totalorder %s24, 1
        %s199 = scalar_select %p198, %s24, 1
        %p200 = scmp.lt.s32.totalorder %s197, 0
        %s201 = scalar_select %p200, %s197, 0
        %s202 = sadd.s32 %s201, %s199
        %s203 = scalar_lea.vmem %s1, %s202
        %p204 = pneg %p93
        %p205 = pneg %p90
        %p206 = pneg %p121
        %p207 = pneg %p118
        %s208 = sand.u32 %s108, 1
        %s209 = scalar_lea.sflag [#allocation5], %s208
        %s210 = sand.u32 %s108, 1
        %s211 = scalar_lea.vmem [#allocation6], %s210
        %s212 = sadd.s32 %s25, %s26
        %s213 = sadd.s32 %s25, %s26
        %p214 = scmp.lt.s32.totalorder %s24, 1
        %s215 = scalar_select %p214, %s24, 1
        %p216 = scmp.lt.s32.totalorder %s213, 0
        %s217 = scalar_select %p216, %s213, 0
        %s218 = sadd.s32 %s217, %s215
        %s219 = scalar_lea.vmem %s1, %s218
        %s220 = sadd.s32 %s25, %s26
        %p221 = scmp.eq.s32.totalorder %s26, 0
        // Predicated region
        $region33: #{tpu_custom_call.1} parent=27 // pred_check
          %p222 = pneg %p221
        $region34: #{tpu_custom_call.1} parent=27 // pred_check_branch
          %224 = sbr.rel (%p222) target = $region36
        $region35: #{tpu_custom_call.1} parent=27 // pred_region
          %225 = vst [vmem:[#allocation2] sm:$0x3] 0.0
        $region36: #{tpu_custom_call.1} parent=27 // pred_fallthru
          _
        %v226 = vld [vmem:[%s219] sm:$0x1]
        %v227 = vunpack.c.0.s8 %v226
        %vm228 = vcmp.eq.s32.totalorder %v227, 0
        %v229 = vld [vmem:[%s185] sm:$0x3]
        %v230 = vsel %vm228, %v229, 0.0
        %vm231 = vcmp.eq.s32.totalorder %v227, 1
        %s232 = scalar_lea.vmem %s185, 2 [#allocation3]
        %v233 = vld [vmem:[%s232] sm:$0x3]
        %v234 = vsel %vm231, %v233, %v230
        %vm235 = vcmp.eq.s32.totalorder %v227, 2
        %s236 = scalar_lea.vmem %s185, 4 [#allocation3]
        %v237 = vld [vmem:[%s236] sm:$0x3]
        %v238 = vsel %vm235, %v237, %v234
        %vm239 = vcmp.eq.s32.totalorder %v227, 3
        %s240 = scalar_lea.vmem %s185, 6 [#allocation3]
        %v241 = vld [vmem:[%s240] sm:$0x3]
        %v242 = vsel %vm239, %v241, %v238
        %v243 = vsub.f32 0.0, %v242
        %v244 = vsub.f32 0.0, %v243
        %v245 = vmul.f32 %v244, 1.442695
        %v246 = vpow.pop %v245
        %v247 = vsub.f32 1.0, %v246
        %v248 = vmul.f32 %v247, %v247
        %v249 = vmul.f32 %v248, %v243
        %v250 = vld [vmem:[#allocation2] sm:$0x3]
        %v251 = vadd.f32 %v250, %v249
        %252 = vst [vmem:[#allocation2] sm:$0x3] %v251
        // Predicated region
        $region37: #{tpu_custom_call.1} parent=27 // pred_check
          %p253 = pneg %p221
        $region38: #{tpu_custom_call.1} parent=27 // pred_check_branch
          %255 = sbr.rel (%p253) target = $region40
        $region39: #{tpu_custom_call.1} parent=27 // pred_region
          %v256 = vld [vmem:[#allocation2] sm:$0x3]
          %vm257 = vcmask 1041408
          %v258 = vsel %vm257, %v256, 0.0
          %v259 = vrot.slane %v258, 4
          %v260 = vadd.f32 %v258, %v259
          %v261 = vrot.slane %v260, 2
          %v262 = vadd.f32 %v260, %v261
          %v263 = vrot.slane %v262, 1
          %v264 = vadd.f32 %v262, %v263
          %265 = vst [vmem:[%s211] sm:$0x1] %v264
        $region40: #{tpu_custom_call.1} parent=27 // pred_fallthru
          _
        %s266 = sand.u32 %s108, 1
        %s267 = scalar_lea.sflag [#allocation5], %s266
        %s268 = sand.u32 %s108, 1
        %s269 = scalar_lea.vmem [#allocation6], %s268
        // Predicated region
        $region41: #{tpu_custom_call.1} parent=27 // pred_check
          %p270 = pneg %p118
        $region42: #{tpu_custom_call.1} parent=27 // pred_check_branch
          %272 = sbr.rel (%p270) target = $region44
        $region43: #{tpu_custom_call.1} parent=27 // pred_region
          %s274 = ssub.s32 16, 16
          %275 = vsyncadd %s267, %s274
          %s276 = sadd.s32 %s25, %s24
          %s277 = smul.addr %s276, 16
          %s278 = scalar_lea.hbm %s2, %s277
          %s280 = sshll.u32 %s269, 4
          %s281 = int_to_ptr.vmem [resolvable:$true] %s280
          %283 = dma.vmem_to_hbm [thread:$0]  %s281, 16, %s278, %s267
        $region44: #{tpu_custom_call.1} parent=27 // pred_fallthru
          _
      $region28: #{tpu_custom_call.1} parent=5 // pred_fallthru
        _
      %p284 = scmp.le.s32.totalorder 2, %s14
      // Predicated region
      $region45: #{tpu_custom_call.1} parent=5 // pred_check
        %p285 = pneg %p284
      $region46: #{tpu_custom_call.1} parent=5 // pred_check_branch
        %287 = sbr.rel (%p285) target = $region48
      $region47: #{tpu_custom_call.1} parent=5 // pred_region
        %s288 = ssub.s32 %s14, 2
        // Predicated region
        $region49: #{tpu_custom_call.1} parent=47 // pred_check
          %p289 = pneg %p124
        $region50: #{tpu_custom_call.1} parent=47 // pred_check_branch
          %291 = sbr.rel (%p289) target = $region52
        $region51: #{tpu_custom_call.1} parent=47 // pred_region
          %s292 = sand.u32 %s109, 1
          %s293 = scalar_lea.sflag [#allocation5], %s292
          %s294 = sand.u32 %s109, 1
          %s295 = scalar_lea.vmem [#allocation6], %s294
          %296 = dma.done %s293, 16
        $region52: #{tpu_custom_call.1} parent=47 // pred_fallthru
          _
      $region48: #{tpu_custom_call.1} parent=5 // pred_fallthru
        _
    $region6: #{tpu_custom_call.1} parent=1 // loop_footer
      %s18 = sadd.s32 1, %s14
    $region7: #{tpu_custom_call.1} parent=1 // loop_footer_branch
      %13 = sbr.rel target = $region3
    $region8: #{tpu_custom_call.1} parent=1 // loop_exit
      _
    %297 = vsyncpa [#allocation4], 1
    %s298 = scalar_lea.sflag [#allocation4], 1
    %299 = vsyncpa %s298, 1
    %300 = vsyncpa [#allocation5], 1
    %s301 = scalar_lea.sflag [#allocation5], 1
    %302 = vsyncpa %s301, 1

</llo_original>
